<compile_context>
chip_gen: v5e
topology: v5e:2x2
jax: 0.10.0
libtpu: 0.0.40
codegen_flags: <defaults>
</compile_context>

<pallas_src>
import jax
import jax.numpy as jnp
from jax.experimental import pallas as pl
from jax.experimental.pallas import tpu as pltpu


def _attn_agg_kernel(x_ref, w_ref, o_ref):
    # x_ref: (TB, N, H)   w_ref: (1, H)   o_ref: (TB, H)
    x = x_ref[...].astype(jnp.float32)                       # (TB, N, H)
    w = w_ref[...].astype(jnp.float32)                       # (1, H)

    # Scores: VPU multiply (w broadcasts for free) + lane reduce over H.
    # (Linear bias omitted: softmax over N is shift-invariant.)
    s = jnp.sum(x * w, axis=-1, keepdims=True)               # (TB, N, 1)

    # Numerically stable, *unnormalized* softmax over the items axis.
    m = jnp.max(s, axis=1, keepdims=True)                    # (TB, 1, 1)
    e = jnp.exp(s - m)                                       # (TB, N, 1)

    # Deferred normalization: unnormalized weighted sum (VPU mul + sublane
    # reduce over N) -> sublane/lane-dense (TB, H) accumulator.
    acc = jnp.sum(e * x, axis=1)                             # (TB, H)
    denom = jnp.sum(e, axis=1)                               # (TB, 1)

    # EUP approx reciprocal + one Newton step (denom >= 1 after the max
    # shift, so this is safe and keeps f32-level accuracy).
    inv = pl.reciprocal(denom, approx=True)
    inv = inv * (2.0 - denom * inv)
    o_ref[...] = (acc * inv).astype(o_ref.dtype)


def _tpu_budgets():
    """Return (x-tile byte budget, vmem_limit_bytes, multi_tensorcore)."""
    try:
        vmem = int(pltpu.get_tpu_info().vmem_capacity_bytes)
    except Exception:
        vmem = None
    if vmem is not None and vmem > 64 * 1024 * 1024:
        # v5e / v6e class: 128 MiB VMEM, single TensorCore per chip.
        return 20 * 1024 * 1024, 64 * 1024 * 1024, False
    # v7x class (64 MiB VMEM per TC, 2 TCs) or unknown: conservative settings
    # that are safe on every generation.
    return 8 * 1024 * 1024, 32 * 1024 * 1024, True


def _choose_block_b(B, N, H, itemsize, tile_budget, multi_core):
    """Number of batch rows per grid step (double-buffered tile fits budget)."""
    per_row = max(1, N * H * itemsize)
    tb = max(1, tile_budget // per_row)
    if multi_core:
        # Keep at least 2 grid steps so both v7x TensorCores get work.
        tb = min(tb, max(1, -(-B // 2)))
    tb = min(tb, B)
    if tb < B:
        # Multi-block grid: sublane-aligned batch blocks (output block (tb,H)).
        tb = max(8, (tb // 8) * 8)
    return tb


def _xla_reference(x, w_row, b=None):
    scores = jnp.einsum("bnh,oh->bno", x, w_row)              # [B, N, 1]
    if b is not None:
        scores = scores + b
    weights = jax.nn.softmax(scores, axis=1)
    return jnp.sum(x * weights, axis=1)                       # [B, H]


def simple_attention_aggregator(x, w, b=None, *, block_b=None, use_pallas=None):
    """Forward pass of SimpleAttentionAggregator.

    x: [B, N, H] float array.
    w: attention weight with H elements — nn.Linear(H, 1).weight ([1, H]) or
       its transpose ([H, 1]).  out_features must be 1.
    b: scalar bias of the Linear layer.  Exactly cancels under the softmax
       over N (shift invariance), so it is dropped on the Pallas path.
    """
    B, N, H = x.shape
    if int(w.size) != H:
        raise ValueError(
            "attention weight must have out_features == 1 "
            f"(got weight of size {int(w.size)} for hidden={H})")
    w_row = jnp.reshape(w, (1, H))
    itemsize = jnp.dtype(x.dtype).itemsize

    tile_budget, vmem_limit, multi_core = _tpu_budgets()

    # Dispatch guards: tiny problems are better served by XLA fusion; rows
    # whose (N, H) slab cannot be double-buffered within the VMEM limit would
    # fail to compile.
    per_row = N * H * itemsize
    too_big = 2 * per_row > (vmem_limit * 3) // 4
    too_small = (H < 128) or (B * per_row < 256 * 1024)
    if use_pallas is None:
        use_pallas = not (too_big or too_small)
    if (not use_pallas) or too_big:
        # TODO(synk): online-softmax N-tiled Pallas path for rows whose N*H
        # slab does not fit VMEM; plain XLA fallback for now.
        return _xla_reference(x, w_row, b)

    tb = block_b if block_b is not None else _choose_block_b(
        B, N, H, itemsize, tile_budget, multi_core)
    n_blocks = -(-B // tb)
    if multi_core and n_blocks > 1 and (n_blocks % 2):
        n_blocks += 1                 # even split across the two TensorCores
    Bp = n_blocks * tb
    xp = x if Bp == B else jnp.pad(x, ((0, Bp - B), (0, 0), (0, 0)))

    cost = pl.CostEstimate(
        flops=4 * B * N * H,
        transcendentals=B * N,
        bytes_accessed=(B * N * H + B * H + H) * itemsize,
    )

    out = pl.pallas_call(
        _attn_agg_kernel,
        out_shape=jax.ShapeDtypeStruct((Bp, H), x.dtype),
        grid=(n_blocks,),
        in_specs=[
            pl.BlockSpec((tb, N, H), lambda i: (i, 0, 0)),
            pl.BlockSpec((1, H), lambda i: (0, 0)),
        ],
        out_specs=pl.BlockSpec((tb, H), lambda i: (i, 0)),
        compiler_params=pltpu.CompilerParams(
            dimension_semantics=("parallel",),
            vmem_limit_bytes=vmem_limit,
        ),
        cost_estimate=cost,
    )(xp, w_row.astype(x.dtype))

    return out[:B] if Bp != B else out


if __name__ == "__main__":
    keys = jax.random.split(jax.random.PRNGKey(0), 6)

    # Small shapes implied by the module: [batch, n_items, hidden_units].
    B, N, H = 2, 8, 32
    x = jax.random.normal(keys[0], (B, N, H), dtype=jnp.float32)
    w = jax.random.normal(keys[1], (H, 1), dtype=jnp.float32) * 0.1
    b = jax.random.normal(keys[2], (), dtype=jnp.float32) * 0.1

    # Force the Pallas path so the kernel itself is exercised even at small
    # shapes (the auto-dispatcher would route this size to plain XLA).
    out = jax.block_until_ready(
        simple_attention_aggregator(x, w, b, use_pallas=True))
    ref = _xla_reference(x, jnp.reshape(w, (1, H)), b)
    assert out.shape == (B, H)
    assert jnp.allclose(out, ref, atol=1e-4, rtol=1e-4), (
        f"max abs err {jnp.max(jnp.abs(out - ref))}")

    # Larger case: multi-block grid (block_b=8), batch padding and a
    # lane-dense H=128 output block.
    B2, N2, H2 = 20, 16, 128
    x2 = jax.random.normal(keys[3], (B2, N2, H2), dtype=jnp.float32)
    w2 = jax.random.normal(keys[4], (H2, 1), dtype=jnp.float32) * 0.1
    b2 = jax.random.normal(keys[5], (), dtype=jnp.float32) * 0.1

    out2 = jax.block_until_ready(
        simple_attention_aggregator(x2, w2, b2, use_pallas=True, block_b=8))
    ref2 = _xla_reference(x2, jnp.reshape(w2, (1, H2)), b2)
    assert out2.shape == (B2, H2)
    assert jnp.allclose(out2, ref2, atol=1e-4, rtol=1e-4), (
        f"max abs err {jnp.max(jnp.abs(out2 - ref2))}")

    print("KERNEL_OK")
</pallas_src>

<mosaic_0001>
module attributes {stable_mosaic.version = 11 : i64} {
  func.func @_attn_agg_kernel(%arg0: i32, %arg1: memref<8x8x32xf32, #tpu.memory_space<vmem>>, %arg2: memref<1x32xf32, #tpu.memory_space<vmem>>, %arg3: memref<8x32xf32, #tpu.memory_space<vmem>>) attributes {dimension_semantics = [#tpu.dimension_semantics<parallel>], iteration_bounds = array<i64: 1>, scalar_prefetch = 0 : i64, scratch_operands = 0 : i64, tpu.core_type = #tpu.core_type<tc>, window_params = [{transform_indices = @transform_0, window_bounds = array<i64: 8, 8, 32>}, {pipeline_mode = #tpu.pipeline_mode<synchronous>, transform_indices = @transform_1, window_bounds = array<i64: 1, 32>}, {transform_indices = @transform_2, window_bounds = array<i64: 8, 32>}]} {
    %c0 = arith.constant 0 : index
    %c0_0 = arith.constant 0 : index
    %c0_1 = arith.constant 0 : index
    %0 = vector.load %arg1[%c0, %c0_0, %c0_1] : memref<8x8x32xf32, #tpu.memory_space<vmem>>, vector<8x8x32xf32>
    %c0_2 = arith.constant 0 : index
    %c0_3 = arith.constant 0 : index
    %1 = vector.load %arg2[%c0_2, %c0_3] : memref<1x32xf32, #tpu.memory_space<vmem>>, vector<1x32xf32>
    %2 = vector.shape_cast %1 : vector<1x32xf32> to vector<1x1x32xf32>
    %3 = vector.broadcast %2 : vector<1x1x32xf32> to vector<8x8x32xf32>
    %4 = arith.mulf %0, %3 : vector<8x8x32xf32>
    %cst = arith.constant dense<0.000000e+00> : vector<8x8xf32>
    %5 = vector.multi_reduction <add>, %4, %cst [2] : vector<8x8x32xf32> to vector<8x8xf32>
    %6 = vector.shape_cast %5 : vector<8x8xf32> to vector<8x8x1xf32>
    %cst_4 = arith.constant dense<0xFF800000> : vector<8x1xf32>
    %7 = vector.multi_reduction <maximumf>, %6, %cst_4 [1] : vector<8x8x1xf32> to vector<8x1xf32>
    %8 = vector.shape_cast %7 : vector<8x1xf32> to vector<8x1x1xf32>
    %9 = vector.broadcast %8 : vector<8x1x1xf32> to vector<8x8x1xf32>
    %10 = arith.subf %6, %9 : vector<8x8x1xf32>
    %11 = math.exp %10 : vector<8x8x1xf32>
    %12 = vector.broadcast %11 : vector<8x8x1xf32> to vector<8x8x32xf32>
    %13 = arith.mulf %12, %0 : vector<8x8x32xf32>
    %cst_5 = arith.constant dense<0.000000e+00> : vector<8x32xf32>
    %14 = vector.multi_reduction <add>, %13, %cst_5 [1] : vector<8x8x32xf32> to vector<8x32xf32>
    %cst_6 = arith.constant dense<0.000000e+00> : vector<8x1xf32>
    %15 = vector.multi_reduction <add>, %11, %cst_6 [1] : vector<8x8x1xf32> to vector<8x1xf32>
    %16 = tpu.reciprocal %15 {approx = true} : vector<8x1xf32> -> vector<8x1xf32>
    %17 = arith.mulf %15, %16 : vector<8x1xf32>
    %cst_7 = arith.constant 2.000000e+00 : f32
    %18 = vector.broadcast %cst_7 : f32 to vector<8x1xf32>
    %19 = arith.subf %18, %17 : vector<8x1xf32>
    %20 = arith.mulf %16, %19 : vector<8x1xf32>
    %21 = vector.broadcast %20 : vector<8x1xf32> to vector<8x32xf32>
    %22 = arith.mulf %14, %21 : vector<8x32xf32>
    %c0_8 = arith.constant 0 : index
    %c0_9 = arith.constant 0 : index
    %23 = vector.load %arg3[%c0_8, %c0_9] : memref<8x32xf32, #tpu.memory_space<vmem>>, vector<8x32xf32>
    tpu.vector_store %arg3[%c0_8, %c0_9], %22 {strides = array<i32>} : memref<8x32xf32, #tpu.memory_space<vmem>>, vector<8x32xf32>,
    return
  }
  func.func @transform_0(%arg0: i32) -> (i32, i32, i32) {
    %c0_i32 = arith.constant 0 : i32
    %c0_i32_0 = arith.constant 0 : i32
    %c0_i32_1 = arith.constant 0 : i32
    return %arg0, %c0_i32, %c0_i32_0 : i32, i32, i32
  }
  func.func @transform_1(%arg0: i32) -> (i32, i32) {
    %c0_i32 = arith.constant 0 : i32
    %c0_i32_0 = arith.constant 0 : i32
    %c0_i32_1 = arith.constant 0 : i32
    return %c0_i32, %c0_i32_0 : i32, i32
  }
  func.func @transform_2(%arg0: i32) -> (i32, i32) {
    %c0_i32 = arith.constant 0 : i32
    %c0_i32_0 = arith.constant 0 : i32
    return %arg0, %c0_i32 : i32, i32
  }
}

</mosaic_0001>

<llo_original>
// kernel: tpu_custom_call.1
$region0: #{tpu_custom_call.1}
  #allocation0 [shape = 'u32[]', space=smem, size = 0x4, offset = 0x4, fixed_abs, tag = 'smem constant byte address 0x4 - core index']
  #allocation1 [shape = 'u32[72,128]{1,0:T(1,128)}', space=vmem, size = 0x9000, scoped, tag = 'internal scratch']
  %s0 = inlined_call_operand.hbm [shape: f32[8,8,32], index: 0, kind: input, shape index: {}]
  %s1 = inlined_call_operand.hbm [shape: f32[1,32], index: 1, kind: input, shape index: {}]
  %s2 = inlined_call_operand.hbm [shape: f32[8,32], index: 2, kind: output, shape index: {}]
  %s3 = sld [smem:[#allocation0]]
  $region26: #{tpu_custom_call.1} parent=0
    _
  %s5 = ssub.s32 1, %s3
  %s6 = scalar_select 0, %s5, %s3
  $region1: #{tpu_custom_call.1} parent=0
    #allocation2 [shape = 'u8[32768]{0}', space=vmem, size = 0x8000, scoped, tag = 'input window, operand 0, single buffered']
    #allocation3 [shape = 's32[1]{0}', space=sflag, size = 0x4, scoped, tag = 'scoped memory for tpu_custom_call.1']
    #allocation4 [shape = 's32[1]{0}', space=sflag, size = 0x4, scoped, tag = 'scoped memory for tpu_custom_call.1']
    #allocation5 [shape = 'u8[512]{0}', space=vmem, size = 0x400, scoped, tag = 'input window, operand 1, single buffered']
    #allocation6 [shape = 's32[1]{0}', space=sflag, size = 0x4, scoped, tag = 'scoped memory for tpu_custom_call.1']
    #allocation7 [shape = 'u8[4096]{0}', space=vmem, size = 0x1000, scoped, tag = 'output window, operand 0, single buffered']
    %7 = vsyncpa [#allocation3], 0
    %8 = vsyncpa [#allocation6], 0
    %9 = vsyncpa [#allocation4], 0
    // Predicated region
    $region2: #{tpu_custom_call.1} parent=1 // pred_check
      _
    $region3: #{tpu_custom_call.1} parent=1 // pred_check_branch
      %11 = sbr.rel (0) target = $region5
    $region4: #{tpu_custom_call.1} parent=1 // pred_region
      %13 = vsyncadd [#allocation3], 0
      %s14 = sshll.u32 %s0, 4
      %s15 = int_to_ptr.hbm [resolvable:$true] %s14
      %s16 = sshll.u32 [#allocation2], 4
      %s17 = int_to_ptr.vmem [resolvable:$true] %s16
      %22 = dma.hbm_to_vmem [thread:$0]  %s15, 1024, %s17, [#allocation3], 128, 128, 8
    $region5: #{tpu_custom_call.1} parent=1 // pred_fallthru
      _
    // Predicated region
    $region6: #{tpu_custom_call.1} parent=1 // pred_check
      _
    $region7: #{tpu_custom_call.1} parent=1 // pred_check_branch
      %24 = sbr.rel (0) target = $region9
    $region8: #{tpu_custom_call.1} parent=1 // pred_region
      %26 = vsyncadd [#allocation6], 0
      %s28 = sshll.u32 %s1, 4
      %s29 = int_to_ptr.hbm [resolvable:$true] %s28
      %s30 = sshll.u32 [#allocation5], 4
      %s31 = int_to_ptr.vmem [resolvable:$true] %s30
      %33 = dma.hbm_to_vmem [thread:$0]  %s29, 16, %s31, [#allocation6]
    $region9: #{tpu_custom_call.1} parent=1 // pred_fallthru
      _
    // Predicated region
    $region10: #{tpu_custom_call.1} parent=1 // pred_check
      _
    $region11: #{tpu_custom_call.1} parent=1 // pred_check_branch
      %35 = sbr.rel (0) target = $region13
    $region12: #{tpu_custom_call.1} parent=1 // pred_region
      %37 = dma.done [#allocation3], 1024
    $region13: #{tpu_custom_call.1} parent=1 // pred_fallthru
      _
    // Predicated region
    $region14: #{tpu_custom_call.1} parent=1 // pred_check
      _
    $region15: #{tpu_custom_call.1} parent=1 // pred_check_branch
      %39 = sbr.rel (0) target = $region17
    $region16: #{tpu_custom_call.1} parent=1 // pred_region
      %41 = dma.done [#allocation6], 16
    $region17: #{tpu_custom_call.1} parent=1 // pred_fallthru
      _
    %v42 = vld [vmem:[#allocation2] sm:$0xff]
    %v43 = vld [vmem:[#allocation2 + $0x8] sm:$0xff]
    %v44 = vld [vmem:[#allocation2 + $0x10] sm:$0xff]
    %v45 = vld [vmem:[#allocation2 + $0x18] sm:$0xff]
    %v46 = vld [vmem:[#allocation2 + $0x20] sm:$0xff]
    %v47 = vld [vmem:[#allocation2 + $0x28] sm:$0xff]
    %v48 = vld [vmem:[#allocation2 + $0x30] sm:$0xff]
    %v49 = vld [vmem:[#allocation2 + $0x38] sm:$0xff]
    %v50 = vld [vmem:[#allocation5] sm:$0x1]
    %v52 = vperm.slane %v50, 0
    %v54 = vmul.f32 %v42, %v52
    %v55 = vmul.f32 %v43, %v52
    %v56 = vmul.f32 %v44, %v52
    %v57 = vmul.f32 %v45, %v52
    %v58 = vmul.f32 %v46, %v52
    %v59 = vmul.f32 %v47, %v52
    %v60 = vmul.f32 %v48, %v52
    %v61 = vmul.f32 %v49, %v52
    %vm62 = vcmask 261120
    %v63 = vsel %vm62, %v54, 0.0
    %64 = vadd.xlane.f32.xlu0 %v63
    %v65 = vpop.xlane.xlu0 %64
    %v66 = vsel %vm62, %v55, 0.0
    %67 = vadd.xlane.f32.xlu0 %v66
    %v68 = vpop.xlane.xlu0 %67
    %v69 = vsel %vm62, %v56, 0.0
    %70 = vadd.xlane.f32.xlu0 %v69
    %v71 = vpop.xlane.xlu0 %70
    %v72 = vsel %vm62, %v57, 0.0
    %73 = vadd.xlane.f32.xlu0 %v72
    %v74 = vpop.xlane.xlu0 %73
    %v75 = vsel %vm62, %v58, 0.0
    %76 = vadd.xlane.f32.xlu0 %v75
    %v77 = vpop.xlane.xlu0 %76
    %v78 = vsel %vm62, %v59, 0.0
    %79 = vadd.xlane.f32.xlu0 %v78
    %v80 = vpop.xlane.xlu0 %79
    %v81 = vsel %vm62, %v60, 0.0
    %82 = vadd.xlane.f32.xlu0 %v81
    %v83 = vpop.xlane.xlu0 %82
    %v84 = vsel %vm62, %v61, 0.0
    %85 = vadd.xlane.f32.xlu0 %v84
    %v86 = vpop.xlane.xlu0 %85
    %v87 = vrot.slane %v65, 4
    %v88 = vmax.f32 %v65, %v87
    %v89 = vrot.slane %v88, 2
    %v90 = vmax.f32 %v88, %v89
    %v91 = vrot.slane %v90, 1
    %v92 = vmax.f32 %v90, %v91
    %v93 = vrot.slane %v68, 4
    %v94 = vmax.f32 %v68, %v93
    %v95 = vrot.slane %v94, 2
    %v96 = vmax.f32 %v94, %v95
    %v97 = vrot.slane %v96, 1
    %v98 = vmax.f32 %v96, %v97
    %v99 = vrot.slane %v71, 4
    %v100 = vmax.f32 %v71, %v99
    %v101 = vrot.slane %v100, 2
    %v102 = vmax.f32 %v100, %v101
    %v103 = vrot.slane %v102, 1
    %v104 = vmax.f32 %v102, %v103
    %v105 = vrot.slane %v74, 4
    %v106 = vmax.f32 %v74, %v105
    %v107 = vrot.slane %v106, 2
    %v108 = vmax.f32 %v106, %v107
    %v109 = vrot.slane %v108, 1
    %v110 = vmax.f32 %v108, %v109
    %v111 = vrot.slane %v77, 4
    %v112 = vmax.f32 %v77, %v111
    %v113 = vrot.slane %v112, 2
    %v114 = vmax.f32 %v112, %v113
    %v115 = vrot.slane %v114, 1
    %v116 = vmax.f32 %v114, %v115
    %v117 = vrot.slane %v80, 4
    %v118 = vmax.f32 %v80, %v117
    %v119 = vrot.slane %v118, 2
    %v120 = vmax.f32 %v118, %v119
    %v121 = vrot.slane %v120, 1
    %v122 = vmax.f32 %v120, %v121
    %v123 = vrot.slane %v83, 4
    %v124 = vmax.f32 %v83, %v123
    %v125 = vrot.slane %v124, 2
    %v126 = vmax.f32 %v124, %v125
    %v127 = vrot.slane %v126, 1
    %v128 = vmax.f32 %v126, %v127
    %v129 = vrot.slane %v86, 4
    %v130 = vmax.f32 %v86, %v129
    %v131 = vrot.slane %v130, 2
    %v132 = vmax.f32 %v130, %v131
    %v133 = vrot.slane %v132, 1
    %v134 = vmax.f32 %v132, %v133
    %v135 = vsub.f32 %v65, %v92
    %v136 = vsub.f32 %v68, %v98
    %v137 = vsub.f32 %v71, %v104
    %v138 = vsub.f32 %v74, %v110
    %v139 = vsub.f32 %v77, %v116
    %v140 = vsub.f32 %v80, %v122
    %v141 = vsub.f32 %v83, %v128
    %v142 = vsub.f32 %v86, %v134
    %v143 = vmul.f32 %v135, 1.442695
    %v144 = vpow.pop %v143
    %v145 = vmul.f32 %v136, 1.442695
    %v146 = vpow.pop %v145
    %v147 = vmul.f32 %v137, 1.442695
    %v148 = vpow.pop %v147
    %v149 = vmul.f32 %v138, 1.442695
    %v150 = vpow.pop %v149
    %v151 = vmul.f32 %v139, 1.442695
    %v152 = vpow.pop %v151
    %v153 = vmul.f32 %v140, 1.442695
    %v154 = vpow.pop %v153
    %v155 = vmul.f32 %v141, 1.442695
    %v156 = vpow.pop %v155
    %v157 = vmul.f32 %v142, 1.442695
    %v158 = vpow.pop %v157
    %v159 = vmul.f32 %v144, %v42
    %v160 = vmul.f32 %v146, %v43
    %v161 = vmul.f32 %v148, %v44
    %v162 = vmul.f32 %v150, %v45
    %v163 = vmul.f32 %v152, %v46
    %v164 = vmul.f32 %v154, %v47
    %v165 = vmul.f32 %v156, %v48
    %v166 = vmul.f32 %v158, %v49
    %v167 = vsel %vm62, %v159, 0.0
    %v168 = vrot.slane %v167, 4
    %v169 = vadd.f32 %v167, %v168
    %v170 = vrot.slane %v169, 2
    %v171 = vadd.f32 %v169, %v170
    %v172 = vrot.slane %v171, 1
    %v173 = vadd.f32 %v171, %v172
    %v174 = vsel %vm62, %v160, 0.0
    %v175 = vrot.slane %v174, 4
    %v176 = vadd.f32 %v174, %v175
    %v177 = vrot.slane %v176, 2
    %v178 = vadd.f32 %v176, %v177
    %v179 = vrot.slane %v178, 1
    %v180 = vadd.f32 %v178, %v179
    %v181 = vsel %vm62, %v161, 0.0
    %v182 = vrot.slane %v181, 4
    %v183 = vadd.f32 %v181, %v182
    %v184 = vrot.slane %v183, 2
    %v185 = vadd.f32 %v183, %v184
    %v186 = vrot.slane %v185, 1
    %v187 = vadd.f32 %v185, %v186
    %v188 = vsel %vm62, %v162, 0.0
    %v189 = vrot.slane %v188, 4
    %v190 = vadd.f32 %v188, %v189
    %v191 = vrot.slane %v190, 2
    %v192 = vadd.f32 %v190, %v191
    %v193 = vrot.slane %v192, 1
    %v194 = vadd.f32 %v192, %v193
    %v195 = vsel %vm62, %v163, 0.0
    %v196 = vrot.slane %v195, 4
    %v197 = vadd.f32 %v195, %v196
    %v198 = vrot.slane %v197, 2
    %v199 = vadd.f32 %v197, %v198
    %v200 = vrot.slane %v199, 1
    %v201 = vadd.f32 %v199, %v200
    %v202 = vsel %vm62, %v164, 0.0
    %v203 = vrot.slane %v202, 4
    %v204 = vadd.f32 %v202, %v203
    %v205 = vrot.slane %v204, 2
    %v206 = vadd.f32 %v204, %v205
    %v207 = vrot.slane %v206, 1
    %v208 = vadd.f32 %v206, %v207
    %v209 = vsel %vm62, %v165, 0.0
    %v210 = vrot.slane %v209, 4
    %v211 = vadd.f32 %v209, %v210
    %v212 = vrot.slane %v211, 2
    %v213 = vadd.f32 %v211, %v212
    %v214 = vrot.slane %v213, 1
    %v215 = vadd.f32 %v213, %v214
    %v216 = vsel %vm62, %v166, 0.0
    %v217 = vrot.slane %v216, 4
    %v218 = vadd.f32 %v216, %v217
    %v219 = vrot.slane %v218, 2
    %v220 = vadd.f32 %v218, %v219
    %v221 = vrot.slane %v220, 1
    %v222 = vadd.f32 %v220, %v221
    %v223 = vrot.slane %v144, 4
    %v224 = vadd.f32 %v144, %v223
    %v225 = vrot.slane %v224, 2
    %v226 = vadd.f32 %v224, %v225
    %v227 = vrot.slane %v226, 1
    %v228 = vadd.f32 %v226, %v227
    %v229 = vrot.slane %v146, 4
    %v230 = vadd.f32 %v146, %v229
    %v231 = vrot.slane %v230, 2
    %v232 = vadd.f32 %v230, %v231
    %v233 = vrot.slane %v232, 1
    %v234 = vadd.f32 %v232, %v233
    %v235 = vrot.slane %v148, 4
    %v236 = vadd.f32 %v148, %v235
    %v237 = vrot.slane %v236, 2
    %v238 = vadd.f32 %v236, %v237
    %v239 = vrot.slane %v238, 1
    %v240 = vadd.f32 %v238, %v239
    %v241 = vrot.slane %v150, 4
    %v242 = vadd.f32 %v150, %v241
    %v243 = vrot.slane %v242, 2
    %v244 = vadd.f32 %v242, %v243
    %v245 = vrot.slane %v244, 1
    %v246 = vadd.f32 %v244, %v245
    %v247 = vrot.slane %v152, 4
    %v248 = vadd.f32 %v152, %v247
    %v249 = vrot.slane %v248, 2
    %v250 = vadd.f32 %v248, %v249
    %v251 = vrot.slane %v250, 1
    %v252 = vadd.f32 %v250, %v251
    %v253 = vrot.slane %v154, 4
    %v254 = vadd.f32 %v154, %v253
    %v255 = vrot.slane %v254, 2
    %v256 = vadd.f32 %v254, %v255
    %v257 = vrot.slane %v256, 1
    %v258 = vadd.f32 %v256, %v257
    %v259 = vrot.slane %v156, 4
    %v260 = vadd.f32 %v156, %v259
    %v261 = vrot.slane %v260, 2
    %v262 = vadd.f32 %v260, %v261
    %v263 = vrot.slane %v262, 1
    %v264 = vadd.f32 %v262, %v263
    %v265 = vrot.slane %v158, 4
    %v266 = vadd.f32 %v158, %v265
    %v267 = vrot.slane %v266, 2
    %v268 = vadd.f32 %v266, %v267
    %v269 = vrot.slane %v268, 1
    %v270 = vadd.f32 %v268, %v269
    %v271 = vrcp.pop %v228
    %v272 = vrcp.pop %v234
    %v273 = vrcp.pop %v240
    %v274 = vrcp.pop %v246
    %v275 = vrcp.pop %v252
    %v276 = vrcp.pop %v258
    %v277 = vrcp.pop %v264
    %v278 = vrcp.pop %v270
    %v279 = vmul.f32 %v228, %v271
    %v280 = vmul.f32 %v234, %v272
    %v281 = vmul.f32 %v240, %v273
    %v282 = vmul.f32 %v246, %v274
    %v283 = vmul.f32 %v252, %v275
    %v284 = vmul.f32 %v258, %v276
    %v285 = vmul.f32 %v264, %v277
    %v286 = vmul.f32 %v270, %v278
    %v287 = vsub.f32 2.0, %v279
    %v288 = vsub.f32 2.0, %v280
    %v289 = vsub.f32 2.0, %v281
    %v290 = vsub.f32 2.0, %v282
    %v291 = vsub.f32 2.0, %v283
    %v292 = vsub.f32 2.0, %v284
    %v293 = vsub.f32 2.0, %v285
    %v294 = vsub.f32 2.0, %v286
    %v295 = vmul.f32 %v271, %v287
    %v296 = vmul.f32 %v272, %v288
    %v297 = vmul.f32 %v273, %v289
    %v298 = vmul.f32 %v274, %v290
    %v299 = vmul.f32 %v275, %v291
    %v300 = vmul.f32 %v276, %v292
    %v301 = vmul.f32 %v277, %v293
    %v302 = vmul.f32 %v278, %v294
    %v303 = vmul.f32 %v173, %v295
    %v304 = vmul.f32 %v180, %v296
    %v305 = vmul.f32 %v187, %v297
    %v306 = vmul.f32 %v194, %v298
    %v307 = vmul.f32 %v201, %v299
    %v308 = vmul.f32 %v208, %v300
    %v309 = vmul.f32 %v215, %v301
    %v310 = vmul.f32 %v222, %v302
    %vm319 = vcmask 1041409
    %v320 = vsel %vm319, %v304, %v303
    %vm321 = vcmask 1042434
    %v322 = vsel %vm321, %v305, %v320
    %vm323 = vcmask 1043459
    %v324 = vsel %vm323, %v306, %v322
    %vm325 = vcmask 1044484
    %v326 = vsel %vm325, %v307, %v324
    %vm327 = vcmask 1045509
    %v328 = vsel %vm327, %v308, %v326
    %vm329 = vcmask 1046534
    %v330 = vsel %vm329, %v309, %v328
    %vm331 = vcmask 1047559
    %v332 = vsel %vm331, %v310, %v330
    %334 = vst.msk [vmem:[#allocation7] sm:$0xff] %vm62, %v332
    // Predicated region
    $region18: #{tpu_custom_call.1} parent=1 // pred_check
      _
    $region19: #{tpu_custom_call.1} parent=1 // pred_check_branch
      %336 = sbr.rel (0) target = $region21
    $region20: #{tpu_custom_call.1} parent=1 // pred_region
      %338 = vsyncadd [#allocation4], 0
      %s340 = sshll.u32 [#allocation7], 4
      %s341 = int_to_ptr.vmem [resolvable:$true] %s340
      %s342 = sshll.u32 %s2, 4
      %s343 = int_to_ptr.hbm [resolvable:$true] %s342
      %345 = dma.vmem_to_hbm [thread:$0]  %s341, 128, %s343, [#allocation4]
    $region21: #{tpu_custom_call.1} parent=1 // pred_fallthru
      _
    // Predicated region
    $region22: #{tpu_custom_call.1} parent=1 // pred_check
      _
    $region23: #{tpu_custom_call.1} parent=1 // pred_check_branch
      %347 = sbr.rel (0) target = $region25
    $region24: #{tpu_custom_call.1} parent=1 // pred_region
      %349 = dma.done [#allocation4], 128
    $region25: #{tpu_custom_call.1} parent=1 // pred_fallthru
      _
    %350 = vsyncpa [#allocation3], 1
    %351 = vsyncpa [#allocation6], 1
    %352 = vsyncpa [#allocation4], 1

</llo_original>
